<compile_context>
chip_gen: v7x
topology: tpu7x:2x2x1
jax: 0.10.0
libtpu: 0.0.40
codegen_flags: <defaults>
</compile_context>

<pallas_src>
import functools
import math

import jax
import jax.numpy as jnp
from jax.experimental import pallas as pl
from jax.experimental.pallas import tpu as pltpu


def _graph_construction_kernel(x_ref, w_ref, b_ref, out_ref, h_ref, *,
                               gram_bf16=False):
    # x_ref:   (BT, N, d_in)   BT batch elements, all N rows
    # w_ref:   (d_in, d_hid)
    # b_ref:   (1, d_hid)
    # out_ref: (BT, TQ, N)     TQ query rows of the adjacency matrix
    # h_ref:   (BT, N, d_hid)  VMEM scratch holding the Linear output
    BT, TQ, N = out_ref.shape

    # ---- Linear once per batch tile (q axis is "arbitrary") ----------------
    @pl.when(pl.program_id(1) == 0)
    def _():
        h = jax.lax.dot_general(
            x_ref[...], w_ref[...],
            dimension_numbers=(((2,), (0,)), ((), ())),
            preferred_element_type=jnp.float32)          # (BT, N, d_hid)
        h_ref[...] = h + b_ref[...]                      # bias broadcasts

    q0 = pl.multiple_of(pl.program_id(1) * TQ, TQ)

    h_k = h_ref[...]                                     # (BT, N, d_hid)
    if TQ == N:
        h_q = h_k                                        # collapsed q grid
    else:
        h_q = h_ref[:, pl.ds(q0, TQ), :]                 # (BT, TQ, d_hid)

    if gram_bf16:
        # Optional: bf16 MXU path (f32 accumulation) for large hidden dims.
        h_q = h_q.astype(jnp.bfloat16)
        h_k = h_k.astype(jnp.bfloat16)

    # ---- Gram matrix: s[b,i,j] = <h_q[b,i], h_k[b,j]> (no transpose) -------
    s = jax.lax.dot_general(
        h_q, h_k,
        dimension_numbers=(((2,), (2,)), ((0,), (0,))),
        preferred_element_type=jnp.float32)              # (BT, TQ, N)

    # ---- 2-D diagonal mask, broadcast over the batch tile ------------------
    rows = jax.lax.broadcasted_iota(jnp.int32, (TQ, N), 0) + q0
    cols = jax.lax.broadcasted_iota(jnp.int32, (TQ, N), 1)
    diag = (rows == cols)[None, :, :]                    # (1, TQ, N)

    # Diagonal -> -1e8 (constant; downstream exp underflows to 0 either way).
    s = jnp.where(diag, -1e8, s)
    # leaky_relu, slope 0.01
    s = jnp.maximum(s, 0.01 * s)

    # ---- exact row-wise softmax (full row resident in the tile) ------------
    m = jnp.max(s, axis=-1, keepdims=True)
    e = jnp.exp(s - m)
    inv = 1.0 / jnp.sum(e, axis=-1, keepdims=True)       # one divide per row
    p = e * inv

    # + eye : diagonal softmax term is exactly 0 (underflow), so add 1 there.
    out_ref[...] = (p + diag.astype(jnp.float32)).astype(out_ref.dtype)


def _vmem_capacity_bytes():
    """Physical VMEM per TensorCore; conservative 64 MiB fallback (v7x)."""
    try:
        info = pltpu.get_tpu_info()
        cap = getattr(info, "vmem_capacity_bytes", None)
        if cap:
            return int(cap)
    except Exception:
        pass
    return 64 << 20


def _pick_row_tile(N, max_rows=512):
    """Full N if small; else the largest multiple-of-8 divisor of N <= max_rows."""
    if N <= max_rows:
        return N
    start = max_rows - (max_rows % 8)
    for t in range(start, 7, -8):
        if N % t == 0:
            return t
    # TODO(synk): awkward N with no multiple-of-8 divisor <= max_rows; a
    # cdiv grid with a masked last row-tile would bound VMEM for such N.
    return N


def _pick_batch_tile(bs, N, TQ, d_in, d_hid, budget_bytes):
    """Largest divisor of bs whose true per-step VMEM footprint fits the budget.

    Footprint counts double-buffered x/out blocks, the h scratch, and the
    full-tile f32 temporaries (s, e, p) the kernel materializes. Caps BT at
    bs//2 so the parallel batch axis keeps >= 2 steps (v7x dual TensorCore).
    """
    max_bt = max(1, bs // 2) if bs >= 2 else 1

    def footprint(bt):
        x_blk = 4 * bt * N * d_in
        out_blk = 4 * bt * TQ * N
        h_scr = 4 * bt * N * d_hid
        temps = 4 * out_blk                   # s, e, p + headroom
        return 2 * x_blk + 2 * out_blk + h_scr + temps

    for bt in range(min(bs, max_bt), 0, -1):
        if bs % bt == 0 and footprint(bt) <= budget_bytes:
            return bt
    return 1


def dot_graph_construction(x, weight, bias, *, row_tile=None, batch_tile=None,
                           gram_bf16=False):
    """x: (bs, N, d_in), weight: (d_in, d_hid), bias: (d_hid,).

    weight is stored as (d_in, d_hid); the kernel does x @ W (PyTorch Linear
    applies W^T, so pass the transposed PyTorch weight here).
    """
    bs, N, d_in = x.shape
    d_hid = weight.shape[1]
    bias2d = bias.reshape(1, d_hid)

    vmem_cap = _vmem_capacity_bytes()
    TQ = row_tile if row_tile is not None else _pick_row_tile(N)
    budget = int(0.45 * vmem_cap)
    BT = batch_tile if batch_tile is not None else _pick_batch_tile(
        bs, N, TQ, d_in, d_hid, budget)

    grid = (bs // BT, N // TQ)

    # VMEM limit: double-buffered blocks + scratch + full-tile temporaries,
    # clamped to 75% of this generation's physical VMEM.
    blk_x = 4 * BT * N * d_in
    blk_w = 4 * d_in * d_hid
    blk_b = 4 * d_hid
    blk_o = 4 * BT * TQ * N
    scr_h = 4 * BT * N * d_hid
    est = 2 * (blk_x + blk_w + blk_b + blk_o) + scr_h + 4 * blk_o + (2 << 20)
    vmem_limit = int(min(max(est, 32 << 20), int(0.75 * vmem_cap)))

    kernel = functools.partial(_graph_construction_kernel, gram_bf16=gram_bf16)

    return pl.pallas_call(
        kernel,
        out_shape=jax.ShapeDtypeStruct((bs, N, N), jnp.float32),
        grid_spec=pltpu.PrefetchScalarGridSpec(
            num_scalar_prefetch=0,
            grid=grid,
            in_specs=[
                pl.BlockSpec((BT, N, d_in), lambda b, q: (b, 0, 0)),
                pl.BlockSpec((d_in, d_hid), lambda b, q: (0, 0)),
                pl.BlockSpec((1, d_hid), lambda b, q: (0, 0)),
            ],
            out_specs=pl.BlockSpec((BT, TQ, N), lambda b, q: (b, q, 0)),
            scratch_shapes=[pltpu.VMEM((BT, N, d_hid), jnp.float32)],
        ),
        compiler_params=pltpu.CompilerParams(
            # batch axis parallel (megacore on v7x); q axis arbitrary so the
            # per-batch-tile h scratch is computed once and reused.
            dimension_semantics=("parallel", "arbitrary"),
            vmem_limit_bytes=vmem_limit),
    )(x, weight, bias2d)


def _reference(x, weight, bias):
    h = jnp.einsum("bnd,dh->bnh", x, weight) + bias
    s = jnp.einsum("bnh,bmh->bnm", h, h)
    n = x.shape[1]
    eye = jnp.eye(n, dtype=jnp.float32)[None]
    s = s - eye * 1e8
    s = jnp.where(s > 0, s, 0.01 * s)
    s = jax.nn.softmax(s, axis=-1)
    return s + eye


if __name__ == "__main__":
    key = jax.random.PRNGKey(0)
    k_x, k_w, k_b = jax.random.split(key, 3)

    # nn.Linear(input_dim, input_dim): hidden_dim == input_dim
    bs, N, input_dim = 2, 16, 32
    hidden_dim = input_dim

    x = jax.random.normal(k_x, (bs, N, input_dim), dtype=jnp.float32)
    # Deterministic "Linear"-style init (uniform +/- 1/sqrt(input_dim))
    bound = 1.0 / math.sqrt(input_dim)
    weight = jax.random.uniform(k_w, (input_dim, hidden_dim),
                                minval=-bound, maxval=bound, dtype=jnp.float32)
    bias = jax.random.uniform(k_b, (hidden_dim,),
                              minval=-bound, maxval=bound, dtype=jnp.float32)

    out = dot_graph_construction(x, weight, bias)
    jax.block_until_ready(out)

    ref = _reference(x, weight, bias)
    assert out.shape == (bs, N, N)
    assert jnp.allclose(out, ref, atol=1e-4, rtol=1e-4), \
        float(jnp.max(jnp.abs(out - ref)))
    print("KERNEL_OK")
</pallas_src>

<mosaic_0001>
module attributes {stable_mosaic.version = 11 : i64} {
  func.func @_graph_construction_kernel(%arg0: i32, %arg1: i32, %arg2: memref<1x16x32xf32, #tpu.memory_space<vmem>>, %arg3: memref<32x32xf32, #tpu.memory_space<vmem>>, %arg4: memref<1x32xf32, #tpu.memory_space<vmem>>, %arg5: memref<1x16x16xf32, #tpu.memory_space<vmem>>, %arg6: memref<1x16x32xf32, #tpu.memory_space<vmem>>) attributes {dimension_semantics = [#tpu.dimension_semantics<parallel>, #tpu.dimension_semantics<arbitrary>], iteration_bounds = array<i64: 2, 1>, scalar_prefetch = 0 : i64, scratch_operands = 1 : i64, tpu.core_type = #tpu.core_type<tc>, window_params = [{transform_indices = @transform_0, window_bounds = array<i64: 1, 16, 32>}, {pipeline_mode = #tpu.pipeline_mode<synchronous>, transform_indices = @transform_1, window_bounds = array<i64: 32, 32>}, {pipeline_mode = #tpu.pipeline_mode<synchronous>, transform_indices = @transform_2, window_bounds = array<i64: 1, 32>}, {transform_indices = @transform_3, window_bounds = array<i64: 1, 16, 16>}]} {
    %c0_i32 = arith.constant 0 : i32
    %0 = arith.cmpi eq, %arg1, %c0_i32 : i32
    %1 = arith.extui %0 : i1 to i32
    %c0_i32_0 = arith.constant 0 : i32
    %2 = arith.cmpi ne, %1, %c0_i32_0 : i32
    scf.if %2 {
      %c0_11 = arith.constant 0 : index
      %c0_12 = arith.constant 0 : index
      %c0_13 = arith.constant 0 : index
      %33 = vector.load %arg2[%c0_11, %c0_12, %c0_13] : memref<1x16x32xf32, #tpu.memory_space<vmem>>, vector<1x16x32xf32>
      %c0_14 = arith.constant 0 : index
      %c0_15 = arith.constant 0 : index
      %34 = vector.load %arg3[%c0_14, %c0_15] : memref<32x32xf32, #tpu.memory_space<vmem>>, vector<32x32xf32>
      %cst_16 = arith.constant dense<0.000000e+00> : vector<1x16x32xf32>
      %35 = tpu.matmul %33, %34, %cst_16 {dimension_numbers = #tpu.dot_dimension_numbers<[2], [0], [0, 1], [1], [0, 0, 0, 1, 1, 1], [], []>} : vector<1x16x32xf32>, vector<32x32xf32>, vector<1x16x32xf32> -> vector<1x16x32xf32>
      %c0_17 = arith.constant 0 : index
      %c0_18 = arith.constant 0 : index
      %36 = vector.load %arg4[%c0_17, %c0_18] : memref<1x32xf32, #tpu.memory_space<vmem>>, vector<1x32xf32>
      %37 = vector.shape_cast %36 : vector<1x32xf32> to vector<1x1x32xf32>
      %38 = vector.broadcast %37 : vector<1x1x32xf32> to vector<1x16x32xf32>
      %39 = arith.addf %35, %38 : vector<1x16x32xf32>
      %c0_19 = arith.constant 0 : index
      %c0_20 = arith.constant 0 : index
      %c0_21 = arith.constant 0 : index
      %40 = vector.load %arg6[%c0_19, %c0_20, %c0_21] : memref<1x16x32xf32, #tpu.memory_space<vmem>>, vector<1x16x32xf32>
      tpu.vector_store %arg6[%c0_19, %c0_20, %c0_21], %39 {strides = array<i32>} : memref<1x16x32xf32, #tpu.memory_space<vmem>>, vector<1x16x32xf32>,
    } else {
    }
    %c16_i32 = arith.constant 16 : i32
    %3 = arith.muli %arg1, %c16_i32 : i32
    %4 = tpu.assume_multiple %3, 16 : i32
    %c0 = arith.constant 0 : index
    %c0_1 = arith.constant 0 : index
    %c0_2 = arith.constant 0 : index
    %5 = vector.load %arg6[%c0, %c0_1, %c0_2] : memref<1x16x32xf32, #tpu.memory_space<vmem>>, vector<1x16x32xf32>
    %cst = arith.constant dense<0.000000e+00> : vector<1x16x16xf32>
    %6 = tpu.matmul %5, %5, %cst {dimension_numbers = #tpu.dot_dimension_numbers<[2], [2], [1], [1], [0, 0, 0, 1, 1, 1], [0], [0]>} : vector<1x16x32xf32>, vector<1x16x32xf32>, vector<1x16x16xf32> -> vector<1x16x16xf32>
    %7 = tpu.iota {dimensions = array<i32: 0>} : vector<16x16xi32>
    %8 = vector.broadcast %4 : i32 to vector<16x16xi32>
    %9 = arith.addi %7, %8 : vector<16x16xi32>
    %10 = tpu.iota {dimensions = array<i32: 1>} : vector<16x16xi32>
    %11 = arith.cmpi eq, %9, %10 : vector<16x16xi32>
    %12 = vector.shape_cast %11 : vector<16x16xi1> to vector<1x16x16xi1>
    %cst_3 = arith.constant -1.000000e+08 : f32
    %13 = vector.broadcast %cst_3 : f32 to vector<1x16x16xf32>
    %14 = arith.select %12, %13, %6 : vector<1x16x16xi1>, vector<1x16x16xf32>
    %cst_4 = arith.constant 0.00999999977 : f32
    %15 = vector.broadcast %cst_4 : f32 to vector<1x16x16xf32>
    %16 = arith.mulf %15, %14 : vector<1x16x16xf32>
    %17 = arith.maximumf %14, %16 : vector<1x16x16xf32>
    %cst_5 = arith.constant dense<0xFF800000> : vector<1x16xf32>
    %18 = vector.multi_reduction <maximumf>, %17, %cst_5 [2] : vector<1x16x16xf32> to vector<1x16xf32>
    %19 = vector.shape_cast %18 : vector<1x16xf32> to vector<1x16x1xf32>
    %20 = vector.broadcast %19 : vector<1x16x1xf32> to vector<1x16x16xf32>
    %21 = arith.subf %17, %20 : vector<1x16x16xf32>
    %22 = math.exp %21 : vector<1x16x16xf32>
    %cst_6 = arith.constant dense<0.000000e+00> : vector<1x16xf32>
    %23 = vector.multi_reduction <add>, %22, %cst_6 [2] : vector<1x16x16xf32> to vector<1x16xf32>
    %24 = vector.shape_cast %23 : vector<1x16xf32> to vector<1x16x1xf32>
    %cst_7 = arith.constant 1.000000e+00 : f32
    %25 = vector.broadcast %cst_7 : f32 to vector<1x16x1xf32>
    %26 = arith.divf %25, %24 : vector<1x16x1xf32>
    %27 = vector.broadcast %26 : vector<1x16x1xf32> to vector<1x16x16xf32>
    %28 = arith.mulf %22, %27 : vector<1x16x16xf32>
    %29 = arith.extui %12 : vector<1x16x16xi1> to vector<1x16x16xi32>
    %30 = arith.sitofp %29 : vector<1x16x16xi32> to vector<1x16x16xf32>
    %31 = arith.addf %28, %30 : vector<1x16x16xf32>
    %c0_8 = arith.constant 0 : index
    %c0_9 = arith.constant 0 : index
    %c0_10 = arith.constant 0 : index
    %32 = vector.load %arg5[%c0_8, %c0_9, %c0_10] : memref<1x16x16xf32, #tpu.memory_space<vmem>>, vector<1x16x16xf32>
    tpu.vector_store %arg5[%c0_8, %c0_9, %c0_10], %31 {strides = array<i32>} : memref<1x16x16xf32, #tpu.memory_space<vmem>>, vector<1x16x16xf32>,
    return
  }
  func.func @transform_0(%arg0: i32, %arg1: i32) -> (i32, i32, i32) {
    %c0_i32 = arith.constant 0 : i32
    %c0_i32_0 = arith.constant 0 : i32
    %c0_i32_1 = arith.constant 0 : i32
    return %arg0, %c0_i32, %c0_i32_0 : i32, i32, i32
  }
  func.func @transform_1(%arg0: i32, %arg1: i32) -> (i32, i32) {
    %c0_i32 = arith.constant 0 : i32
    %c0_i32_0 = arith.constant 0 : i32
    %c0_i32_1 = arith.constant 0 : i32
    return %c0_i32, %c0_i32_0 : i32, i32
  }
  func.func @transform_2(%arg0: i32, %arg1: i32) -> (i32, i32) {
    %c0_i32 = arith.constant 0 : i32
    %c0_i32_0 = arith.constant 0 : i32
    %c0_i32_1 = arith.constant 0 : i32
    return %c0_i32, %c0_i32_0 : i32, i32
  }
  func.func @transform_3(%arg0: i32, %arg1: i32) -> (i32, i32, i32) {
    %c0_i32 = arith.constant 0 : i32
    %c0_i32_0 = arith.constant 0 : i32
    return %arg0, %arg1, %c0_i32 : i32, i32, i32
  }
}

</mosaic_0001>

<llo_original>
// kernel: tpu_custom_call.1
$region0: #{tpu_custom_call.1}
  #allocation0 [shape = 'u32[]', space=smem, size = 0x4, offset = 0x4, fixed_abs, tag = 'smem constant byte address 0x4 - core index']
  #allocation1 [shape = 'u32[144,128]{1,0:T(1,128)}', space=vmem, size = 0x12000, scoped, tag = 'internal scratch']
  #allocation2 [shape = 'f32[1,16,32]{2,1,0:T(8,128)}', space=vmem, size = 0x2000, scoped, tag = 'scratch operand']
  %s0 = inlined_call_operand.hbm [shape: f32[2,16,32], index: 0, kind: input, shape index: {}]
  %s1 = inlined_call_operand.hbm [shape: f32[32,32], index: 1, kind: input, shape index: {}]
  %s2 = inlined_call_operand.vmem [shape: f32[1,32], index: 2, kind: input, shape index: {}]
  %s3 = inlined_call_operand.hbm [shape: f32[2,16,16], index: 3, kind: output, shape index: {}]
  %s4 = sld [smem:[#allocation0]]
  $region57: #{tpu_custom_call.1} parent=0
    _
  %s6 = ssub.s32 1, %s4
  %s7 = scalar_select 0, %s6, %s4
  $region1: #{tpu_custom_call.1} parent=0
    #allocation3 [shape = 'u8[16384]{0}', space=vmem, size = 0x4000, scoped, tag = 'input window, operand 0']
    #allocation4 [shape = 's32[2]{0}', space=sflag, size = 0x8, scoped, tag = 'scoped memory for tpu_custom_call.1']
    #allocation5 [shape = 's32[2]{0}', space=sflag, size = 0x8, scoped, tag = 'scoped memory for tpu_custom_call.1']
    #allocation6 [shape = 'u8[16384]{0}', space=vmem, size = 0x4000, scoped, tag = 'input window, operand 1, single buffered']
    #allocation7 [shape = 's32[1]{0}', space=sflag, size = 0x4, scoped, tag = 'scoped memory for tpu_custom_call.1']
    #allocation8 [shape = 'u8[16384]{0}', space=vmem, size = 0x4000, scoped, tag = 'output window, operand 0']
    %8 = vsyncpa [#allocation4], 0
    %s9 = scalar_lea.sflag [#allocation4], 1
    %10 = vsyncpa %s9, 0
    %11 = vsyncpa [#allocation7], 0
    %12 = vsyncpa [#allocation5], 0
    %s13 = scalar_lea.sflag [#allocation5], 1
    %14 = vsyncpa %s13, 0
    loop: start=0, step=1, limit=4
    $region2: #{tpu_custom_call.1} parent=1 // loop_pre_header
      _
    $region3: #{tpu_custom_call.1} parent=1 // loop_header
      %s16 = sphi 0, %s20
      %p17 = scmp.ge.s32.totalorder %s16, 4
      %s23 = sphi 0, %s35
      %s24 = sphi 0, %s31
      %s25 = sphi 0, %s23
      %s26 = sphi 0, %s24
      %s27 = sphi 0, %s25
      %s28 = sphi 0, %s26
      %s38 = sphi 0, %s40
      %s41 = sphi 0, %s38
      %s42 = sphi 0, %s41
      %s58 = sphi 0, %s42
      %s62 = sphi 0, %s62
      %s64 = sphi 0, %s62
      %s65 = sphi 0, %s64
      %s79 = sphi 0, %s65
      %s83 = sphi 0, %s83
      %s85 = sphi 0, %s83
      %s86 = sphi 0, %s85
      %s100 = sphi 0, %s86
      %s108 = sphi 0, %s110
      %s111 = sphi 0, %s108
      %s112 = sphi 0, %s111
      %s128 = sphi 0, %s112
    $region4: #{tpu_custom_call.1} parent=1 // loop_header_branch
      %19 = sbr.rel (%p17) target = $region8
    $region5: #{tpu_custom_call.1} parent=1 // loop_body
      %s21 = ssub.s32 %s16, 1
      %s22 = ssub.s32 %s16, 2
      %s29 = sadd.s32 1, %s24
      %p30 = scmp.ge.s32.totalorder %s29, 1
      %s31 = scalar_select %p30, 0, %s29
      %s32 = sadd.s32 1, %s23
      %s33 = scalar_select %p30, %s32, %s23
      %p34 = scmp.ge.s32.totalorder %s33, 2
      %s35 = scalar_select %p34, 0, %s33
      %s36 = ssub.s32 %s23, %s35
      %p37 = scmp.eq.s32.totalorder %s36, 0
      %s39 = sadd.s32 %s38, 1
      %s40 = scalar_select %p37, %s38, %s39
      %p43 = pneg %p37
      %p44 = scmp.eq.s32.totalorder %s16, 1
      %p45 = por %p43, %p44
      %p46 = scmp.ne.s32.totalorder %s38, %s41
      %p47 = scmp.eq.s32.totalorder %s16, 0
      %p48 = por %p46, %p47
      %p49 = scmp.ne.s32.totalorder %s38, %s41
      %p50 = scmp.eq.s32.totalorder %s21, 1
      %p51 = por %p49, %p50
      %p52 = scmp.ne.s32.totalorder %s41, %s42
      %p53 = scmp.eq.s32.totalorder %s21, 0
      %p54 = por %p52, %p53
      %p55 = scmp.ne.s32.totalorder %s41, %s42
      %p56 = scmp.eq.s32.totalorder %s22, 1
      %p57 = por %p55, %p56
      %p59 = scmp.ne.s32.totalorder %s42, %s58
      %p60 = scmp.eq.s32.totalorder %s22, 0
      %p61 = por %p59, %p60
      %s63 = sadd.s32 %s62, 1
      %p66 = scmp.eq.s32.totalorder %s16, 1
      %p67 = scmp.ne.s32.totalorder %s62, %s64
      %p68 = scmp.eq.s32.totalorder %s16, 0
      %p69 = por %p67, %p68
      %p70 = scmp.ne.s32.totalorder %s62, %s64
      %p71 = scmp.eq.s32.totalorder %s21, 1
      %p72 = por %p70, %p71
      %p73 = scmp.ne.s32.totalorder %s64, %s65
      %p74 = scmp.eq.s32.totalorder %s21, 0
      %p75 = por %p73, %p74
      %p76 = scmp.ne.s32.totalorder %s64, %s65
      %p77 = scmp.eq.s32.totalorder %s22, 1
      %p78 = por %p76, %p77
      %p80 = scmp.ne.s32.totalorder %s65, %s79
      %p81 = scmp.eq.s32.totalorder %s22, 0
      %p82 = por %p80, %p81
      %s84 = sadd.s32 %s83, 1
      %p87 = scmp.eq.s32.totalorder %s16, 1
      %p88 = scmp.ne.s32.totalorder %s83, %s85
      %p89 = scmp.eq.s32.totalorder %s16, 0
      %p90 = por %p88, %p89
      %p91 = scmp.ne.s32.totalorder %s83, %s85
      %p92 = scmp.eq.s32.totalorder %s21, 1
      %p93 = por %p91, %p92
      %p94 = scmp.ne.s32.totalorder %s85, %s86
      %p95 = scmp.eq.s32.totalorder %s21, 0
      %p96 = por %p94, %p95
      %p97 = scmp.ne.s32.totalorder %s85, %s86
      %p98 = scmp.eq.s32.totalorder %s22, 1
      %p99 = por %p97, %p98
      %p101 = scmp.ne.s32.totalorder %s86, %s100
      %p102 = scmp.eq.s32.totalorder %s22, 0
      %p103 = por %p101, %p102
      %s104 = ssub.s32 %s23, %s35
      %s105 = ssub.s32 %s24, %s31
      %s106 = sor.u32 %s104, %s105
      %p107 = scmp.eq.s32.totalorder %s106, 0
      %s109 = sadd.s32 %s108, 1
      %s110 = scalar_select %p107, %s108, %s109
      %p113 = pneg %p107
      %p114 = scmp.eq.s32.totalorder %s16, 1
      %p115 = por %p113, %p114
      %p116 = scmp.ne.s32.totalorder %s108, %s111
      %p117 = scmp.eq.s32.totalorder %s16, 0
      %p118 = por %p116, %p117
      %p119 = scmp.ne.s32.totalorder %s108, %s111
      %p120 = scmp.eq.s32.totalorder %s21, 1
      %p121 = por %p119, %p120
      %p122 = scmp.ne.s32.totalorder %s111, %s112
      %p123 = scmp.eq.s32.totalorder %s21, 0
      %p124 = por %p122, %p123
      %p125 = scmp.ne.s32.totalorder %s111, %s112
      %p126 = scmp.eq.s32.totalorder %s22, 1
      %p127 = por %p125, %p126
      %p129 = scmp.ne.s32.totalorder %s112, %s128
      %p130 = scmp.eq.s32.totalorder %s22, 0
      %p131 = por %p129, %p130
      %p132 = scmp.le.s32.totalorder 1, %s16
      %p133 = scmp.lt.s32.totalorder %s16, 3
      %p134 = pnand %p132, %p133
      %p135 = pneg %p134
      // Predicated region
      $region9: #{tpu_custom_call.1} parent=5 // pred_check
        _
      $region10: #{tpu_custom_call.1} parent=5 // pred_check_branch
        %137 = sbr.rel (%p134) target = $region12
      $region11: #{tpu_custom_call.1} parent=5 // pred_region
        %s138 = ssub.s32 %s16, 1
        // Predicated region
        $region13: #{tpu_custom_call.1} parent=11 // pred_check
          %p139 = pneg %p75
        $region14: #{tpu_custom_call.1} parent=11 // pred_check_branch
          %141 = sbr.rel (%p139) target = $region16
        $region15: #{tpu_custom_call.1} parent=11 // pred_region
          %s143 = ssub.s32 512, 512
          %144 = vsyncadd [#allocation7], %s143
          %s145 = sshll.u32 [#allocation6], 4
          %s146 = int_to_ptr.vmem [resolvable:$true] %s145
          %151 = dma.hbm_to_vmem [thread:$0]  %s1, 512, %s146, [#allocation7], 128, 128, 8
        $region16: #{tpu_custom_call.1} parent=11 // pred_fallthru
          _
        // Predicated region
        $region17: #{tpu_custom_call.1} parent=11 // pred_check
          %p152 = pneg %p96
        $region18: #{tpu_custom_call.1} parent=11 // pred_check_branch
          %154 = sbr.rel (%p152) target = $region20
        $region19: #{tpu_custom_call.1} parent=11 // pred_region
          _
        $region20: #{tpu_custom_call.1} parent=11 // pred_fallthru
          _
      $region12: #{tpu_custom_call.1} parent=5 // pred_fallthru
        _
      %p155 = scmp.lt.s32.totalorder %s16, 2
      // Predicated region
      $region21: #{tpu_custom_call.1} parent=5 // pred_check
        %p156 = pneg %p155
      $region22: #{tpu_custom_call.1} parent=5 // pred_check_branch
        %158 = sbr.rel (%p156) target = $region24
      $region23: #{tpu_custom_call.1} parent=5 // pred_region
        // Predicated region
        $region25: #{tpu_custom_call.1} parent=23 // pred_check
          %p159 = pneg %p48
        $region26: #{tpu_custom_call.1} parent=23 // pred_check_branch
          %161 = sbr.rel (%p159) target = $region28
        $region27: #{tpu_custom_call.1} parent=23 // pred_region
          %s162 = sand.u32 %s38, 1
          %s163 = scalar_lea.sflag [#allocation4], %s162
          %s164 = sand.u32 %s38, 1
          %s165 = smul.addr %s164, 16
          %s166 = scalar_lea.vmem [#allocation3], %s165
          %s168 = ssub.s32 256, 256
          %169 = vsyncadd %s163, %s168
          %s170 = smul.addr %s23, 2
          %s171 = smul.addr %s170, 128
          %s172 = scalar_lea.hbm %s0, %s171
          %s173 = sshll.u32 %s166, 4
          %s174 = int_to_ptr.vmem [resolvable:$true] %s173
          %179 = dma.hbm_to_vmem [thread:$0]  %s172, 256, %s174, %s163, 128, 128, 8
        $region28: #{tpu_custom_call.1} parent=23 // pred_fallthru
          _
      $region24: #{tpu_custom_call.1} parent=5 // pred_fallthru
        _
      %p180 = scmp.le.s32.totalorder 1, %s16
      %p181 = scmp.lt.s32.totalorder %s16, 3
      %p182 = pnand %p180, %p181
      %p183 = pneg %p182
      // Predicated region
      $region29: #{tpu_custom_call.1} parent=5 // pred_check
        _
      $region30: #{tpu_custom_call.1} parent=5 // pred_check_branch
        %185 = sbr.rel (%p182) target = $region32
      $region31: #{tpu_custom_call.1} parent=5 // pred_region
        %s186 = ssub.s32 %s16, 1
        %s187 = sand.u32 %s41, 1
        %s188 = scalar_lea.sflag [#allocation4], %s187
        %s189 = sand.u32 %s41, 1
        %s190 = smul.addr %s189, 16
        %s191 = scalar_lea.vmem [#allocation3], %s190
        // Predicated region
        $region33: #{tpu_custom_call.1} parent=31 // pred_check
          %p192 = pneg %p54
        $region34: #{tpu_custom_call.1} parent=31 // pred_check_branch
          %194 = sbr.rel (%p192) target = $region36
        $region35: #{tpu_custom_call.1} parent=31 // pred_region
          %195 = dma.done %s188, 256
        $region36: #{tpu_custom_call.1} parent=31 // pred_fallthru
          _
        // Predicated region
        $region37: #{tpu_custom_call.1} parent=31 // pred_check
          %p196 = pneg %p75
        $region38: #{tpu_custom_call.1} parent=31 // pred_check_branch
          %198 = sbr.rel (%p196) target = $region40
        $region39: #{tpu_custom_call.1} parent=31 // pred_region
          %199 = dma.done [#allocation7], 512
        $region40: #{tpu_custom_call.1} parent=31 // pred_fallthru
          _
        %s200 = sand.u32 %s41, 1
        %s201 = scalar_lea.sflag [#allocation4], %s200
        %s202 = sand.u32 %s41, 1
        %s203 = smul.addr %s202, 16
        %s204 = scalar_lea.vmem [#allocation3], %s203
        %p205 = pneg %p54
        %p206 = pneg %p51
        %p207 = pneg %p75
        %p208 = pneg %p72
        %p209 = pneg %p96
        %p210 = pneg %p93
        %p211 = pneg %p124
        %p212 = pneg %p121
        %s213 = sand.u32 %s111, 1
        %s214 = scalar_lea.sflag [#allocation5], %s213
        %s215 = sand.u32 %s111, 1
        %s216 = smul.addr %s215, 16
        %s217 = scalar_lea.vmem [#allocation8], %s216
        %s218 = smul.u32 2, %s26
        %p219 = scmp.eq.s32.totalorder %s26, 0
        // Predicated region
        $region41: #{tpu_custom_call.1} parent=31 // pred_check
          %p220 = pneg %p219
        $region42: #{tpu_custom_call.1} parent=31 // pred_check_branch
          %222 = sbr.rel (%p220) target = $region44
        $region43: #{tpu_custom_call.1} parent=31 // pred_region
          %v223 = vld [vmem:[%s191] sm:$0xff]
          %v224 = vld [vmem:[%s191 + $0x8] sm:$0xff]
          %v225 = vld [vmem:[#allocation6] sm:$0xff]
          %v226 = vld [vmem:[#allocation6 + $0x8] sm:$0xff]
          %v227 = vld [vmem:[#allocation6 + $0x10] sm:$0xff]
          %v228 = vld [vmem:[#allocation6 + $0x18] sm:$0xff]
          %v229 = vld [vmem:[%s2] sm:$0x1]
          %v231 = vlaneseq
          %v232 = vshrl.u32 %v231, 7
          %v233 = vsub.s32 0, %v232
          %v234 = vrot.slane %v229, %v233
          %vm236 = vcmask 261120
          %v238 = vsel %vm236, %v223, 0
          %v241 = vsel %vm236, %v224, 0
          %243 = vmatprep.subr.mxu0 0.0
          %244 = vmatpush1.msra.mxu0 %v225
          %245 = vmatprep.subr.mxu0 0.0
          %246 = vmatpush1.msra.mxu0 %v226
          %247 = vmatprep.subr.mxu0 0.0
          %248 = vmatpush1.msra.mxu0 %v227
          %249 = vmatprep.subr.mxu0 0.0
          %250 = vmatpush1.msra.mxu0 %v228
          %251 = vmatprep.subr.mxu0 0.0
          %252 = vmatpush1.msra.mxu0 0.0
          %253 = vmatprep.subr.mxu0 0.0
          %254 = vmatpush1.msra.mxu0 0.0
          %255 = vmatprep.subr.mxu0 0.0
          %256 = vmatpush1.msra.mxu0 0.0
          %257 = vmatprep.subr.mxu0 0.0
          %258 = vmatpush1.msra.mxu0 0.0
          %259 = vmatprep.subr.mxu0 0.0
          %260 = vmatpush1.msra.mxu0 0.0
          %261 = vmatprep.subr.mxu0 0.0
          %262 = vmatpush1.msra.mxu0 0.0
          %263 = vmatprep.subr.mxu0 0.0
          %264 = vmatpush1.msra.mxu0 0.0
          %265 = vmatprep.subr.mxu0 0.0
          %266 = vmatpush1.msra.mxu0 0.0
          %267 = vmatprep.subr.mxu0 0.0
          %268 = vmatpush1.msra.mxu0 0.0
          %269 = vmatprep.subr.mxu0 0.0
          %270 = vmatpush1.msra.mxu0 0.0
          %271 = vmatprep.subr.mxu0 0.0
          %272 = vmatpush1.msra.mxu0 0.0
          %273 = vmatprep.subr.mxu0 0.0
          %274 = vmatpush1.msra.mxu0 0.0
          %275 = vmatprep.subr.mxu0 0.0
          %276 = vmatpush1.msra.mxu0 0.0
          %277 = vmatprep.subr.mxu0 0.0
          %278 = vmatpush1.msra.mxu0 0.0
          %279 = vmatprep.subr.mxu0 0.0
          %280 = vmatpush1.msra.mxu0 0.0
          %281 = vmatprep.subr.mxu0 0.0
          %282 = vmatpush1.msra.mxu0 0.0
          %283 = vmatprep.subr.mxu0 0.0
          %284 = vmatpush1.msra.mxu0 0.0
          %285 = vmatprep.subr.mxu0 0.0
          %286 = vmatpush1.msra.mxu0 0.0
          %287 = vmatprep.subr.mxu0 0.0
          %288 = vmatpush1.msra.mxu0 0.0
          %289 = vmatprep.subr.mxu0 0.0
          %290 = vmatpush1.msra.mxu0 0.0
          %291 = vmatprep.subr.mxu0 0.0
          %292 = vmatpush1.msra.mxu0 0.0
          %293 = vmatprep.subr.mxu0 0.0
          %294 = vmatpush1.msra.mxu0 0.0
          %295 = vmatprep.subr.mxu0 0.0
          %296 = vmatpush1.msra.mxu0 0.0
          %297 = vmatprep.subr.mxu0 0.0
          %298 = vmatpush1.msra.mxu0 0.0
          %299 = vmatprep.subr.mxu0 0.0
          %300 = vmatpush1.msra.mxu0 0.0
          %301 = vmatprep.subr.mxu0 0.0
          %302 = vmatpush1.msra.mxu0 0.0
          %303 = vmatprep.subr.mxu0 0.0
          %304 = vmatpush1.msra.mxu0 0.0
          %305 = vmatprep.subr.mxu0 0.0
          %306 = vmatpush1.msra.mxu0 0.0
          %307 = vmatprep.mubr.f32.mxu0 0.0
          %308 = vmatmul.mubr.f32.gmra.mrb[0].mxu0 %v238
          %v309 = vpop.f32.mrb[0].mxu0
          %v310 = vadd.f32 %v234, %v309
          %v311 = vpop.f32.mrb[0].mxu0
          %312 = vmatprep.mubr.f32.mxu0 0.0
          %313 = vmatmul.mubr.f32.gmra.mrb[0].mxu0 %v241
          %v314 = vpop.f32.mrb[0].mxu0
          %v315 = vadd.f32 %v234, %v314
          %v316 = vpop.f32.mrb[0].mxu0
          %317 = vdwg.mxu0
          %318 = vst.msk [vmem:[#allocation2] sm:$0xff] %vm236, %v310
          %319 = vst.msk [vmem:[#allocation2 + $0x8] sm:$0xff] %vm236, %v315
        $region44: #{tpu_custom_call.1} parent=31 // pred_fallthru
          _
        %s320 = smul.u32 %s26, 16
        %v321 = vld [vmem:[#allocation2] sm:$0xff]
        %v322 = vld [vmem:[#allocation2 + $0x8] sm:$0xff]
        %vm323 = vcmask 261120
        %v325 = vsel %vm323, %v321, 0
        %v328 = vsel %vm323, %v322, 0
        %330 = vmatprep.subr.mxu0 0.0
        %331 = vmatpush1.xpose.msra.mxu0 %v325
        %332 = vmatprep.subr.mxu0 0.0
        %333 = vmatpush1.xpose.msra.mxu0 %v328
        %334 = vmatprep.subr.mxu0 0.0
        %335 = vmatpush1.xpose.msra.mxu0 0.0
        %336 = vmatprep.subr.mxu0 0.0
        %337 = vmatpush1.xpose.msra.mxu0 0.0
        %338 = vmatprep.subr.mxu0 0.0
        %339 = vmatpush1.xpose.msra.mxu0 0.0
        %340 = vmatprep.subr.mxu0 0.0
        %341 = vmatpush1.xpose.msra.mxu0 0.0
        %342 = vmatprep.subr.mxu0 0.0
        %343 = vmatpush1.xpose.msra.mxu0 0.0
        %344 = vmatprep.subr.mxu0 0.0
        %345 = vmatpush1.xpose.msra.mxu0 0.0
        %346 = vmatprep.subr.mxu0 0.0
        %347 = vmatpush1.xpose.msra.mxu0 0.0
        %348 = vmatprep.subr.mxu0 0.0
        %349 = vmatpush1.xpose.msra.mxu0 0.0
        %350 = vmatprep.subr.mxu0 0.0
        %351 = vmatpush1.xpose.msra.mxu0 0.0
        %352 = vmatprep.subr.mxu0 0.0
        %353 = vmatpush1.xpose.msra.mxu0 0.0
        %354 = vmatprep.subr.mxu0 0.0
        %355 = vmatpush1.xpose.msra.mxu0 0.0
        %356 = vmatprep.subr.mxu0 0.0
        %357 = vmatpush1.xpose.msra.mxu0 0.0
        %358 = vmatprep.subr.mxu0 0.0
        %359 = vmatpush1.xpose.msra.mxu0 0.0
        %360 = vmatprep.subr.mxu0 0.0
        %361 = vmatpush1.xpose.msra.mxu0 0.0
        %362 = vmatprep.subr.mxu0 0.0
        %363 = vmatpush1.xpose.msra.mxu0 0.0
        %364 = vmatprep.subr.mxu0 0.0
        %365 = vmatpush1.xpose.msra.mxu0 0.0
        %366 = vmatprep.subr.mxu0 0.0
        %367 = vmatpush1.xpose.msra.mxu0 0.0
        %368 = vmatprep.subr.mxu0 0.0
        %369 = vmatpush1.xpose.msra.mxu0 0.0
        %370 = vmatprep.subr.mxu0 0.0
        %371 = vmatpush1.xpose.msra.mxu0 0.0
        %372 = vmatprep.subr.mxu0 0.0
        %373 = vmatpush1.xpose.msra.mxu0 0.0
        %374 = vmatprep.subr.mxu0 0.0
        %375 = vmatpush1.xpose.msra.mxu0 0.0
        %376 = vmatprep.subr.mxu0 0.0
        %377 = vmatpush1.xpose.msra.mxu0 0.0
        %378 = vmatprep.subr.mxu0 0.0
        %379 = vmatpush1.xpose.msra.mxu0 0.0
        %380 = vmatprep.subr.mxu0 0.0
        %381 = vmatpush1.xpose.msra.mxu0 0.0
        %382 = vmatprep.subr.mxu0 0.0
        %383 = vmatpush1.xpose.msra.mxu0 0.0
        %384 = vmatprep.subr.mxu0 0.0
        %385 = vmatpush1.xpose.msra.mxu0 0.0
        %386 = vmatprep.subr.mxu0 0.0
        %387 = vmatpush1.xpose.msra.mxu0 0.0
        %388 = vmatprep.subr.mxu0 0.0
        %389 = vmatpush1.xpose.msra.mxu0 0.0
        %390 = vmatprep.subr.mxu0 0.0
        %391 = vmatpush1.xpose.msra.mxu0 0.0
        %392 = vmatprep.subr.mxu0 0.0
        %393 = vmatpush1.xpose.msra.mxu0 0.0
        %394 = vmatprep.mubr.f32.mxu0 0.0
        %395 = vmatmul.mubr.f32.gmra.mrb[0].mxu0 %v325
        %v396 = vpop.f32.mrb[0].mxu0
        %v397 = vadd.f32 0.0, %v396
        %v398 = vpop.f32.mrb[0].mxu0
        %399 = vmatprep.mubr.f32.mxu0 0.0
        %400 = vmatmul.mubr.f32.gmra.mrb[0].mxu0 %v328
        %v401 = vpop.f32.mrb[0].mxu0
        %v402 = vadd.f32 0.0, %v401
        %v403 = vpop.f32.mrb[0].mxu0
        %404 = vdwg.mxu0
        %v405 = vlaneseq
        %v406 = vshrl.u32 %v405, 7
        %v407 = vadd.s32 %v406, 8
        %v408 = vstv %s320
        %v409 = vadd.s32 %v406, %v408
        %v410 = vadd.s32 %v407, %v408
        %v411 = vlaneseq
        %v412 = vand.u32 %v411, 127
        %vm413 = vcmp.eq.s32.totalorder %v409, %v412
        %vm414 = vcmp.eq.s32.totalorder %v410, %v412
        %v415 = vsel %vm413, -1e+08, %v397
        %v416 = vsel %vm414, -1e+08, %v402
        %v417 = vmul.f32 %v415, 0.01
        %v418 = vmul.f32 %v416, 0.01
        %v419 = vmax.f32 %v415, %v417
        %v420 = vmax.f32 %v416, %v418
        %vm421 = vcmask 130048
        %v422 = vsel %vm421, %v419, -inf
        %423 = vmax.xlane.f32.xlu0 %v422
        %v424 = vpop.xlane.xlu0 %423
        %v425 = vsel %vm421, %v420, -inf
        %426 = vmax.xlane.f32.xlu0 %v425
        %v427 = vpop.xlane.xlu0 %426
        %v428 = vsub.f32 %v419, %v424
        %v429 = vsub.f32 %v420, %v427
        %v430 = vmul.f32 %v428, 1.442695
        %v431 = vpow.pop %v430
        %v432 = vmul.f32 %v429, 1.442695
        %v433 = vpow.pop %v432
        %v434 = vsel %vm421, %v431, 0.0
        %435 = vadd.xlane.f32.xlu0 %v434
        %v436 = vpop.xlane.xlu0 %435
        %v437 = vsel %vm421, %v433, 0.0
        %438 = vadd.xlane.f32.xlu0 %v437
        %v439 = vpop.xlane.xlu0 %438
        %v440 = vrcp.pop %v436
        %v441 = vmul.f32 1.0, %v440
        %v442 = vrcp.pop %v439
        %v443 = vmul.f32 1.0, %v442
        %v444 = vmul.f32 %v431, %v441
        %v445 = vmul.f32 %v433, %v443
        %v446 = vsel %vm413, 1, 0
        %v447 = vsel %vm414, 1, 0
        %v448 = vcvt.s32.f32 %v446
        %v449 = vcvt.s32.f32 %v447
        %v450 = vadd.f32 %v444, %v448
        %v451 = vadd.f32 %v445, %v449
        %452 = vst.msk [vmem:[%s217] sm:$0xff] %vm421, %v450
        %453 = vst.msk [vmem:[%s217 + $0x8] sm:$0xff] %vm421, %v451
        %s454 = sand.u32 %s111, 1
        %s455 = scalar_lea.sflag [#allocation5], %s454
        %s456 = sand.u32 %s111, 1
        %s457 = smul.addr %s456, 16
        %s458 = scalar_lea.vmem [#allocation8], %s457
        // Predicated region
        $region45: #{tpu_custom_call.1} parent=31 // pred_check
          %p459 = pneg %p121
        $region46: #{tpu_custom_call.1} parent=31 // pred_check_branch
          %461 = sbr.rel (%p459) target = $region48
        $region47: #{tpu_custom_call.1} parent=31 // pred_region
          %s462 = smul.u32 2, %s26
          %s464 = ssub.s32 256, 256
          %465 = vsyncadd %s455, %s464
          %s466 = smul.addr %s25, 2
          %s467 = sadd.s32 %s462, %s466
          %s468 = smul.addr %s467, 128
          %s469 = scalar_lea.hbm %s3, %s468
          %s470 = sshll.u32 %s458, 4
          %s471 = int_to_ptr.vmem [resolvable:$true] %s470
          %476 = dma.vmem_to_hbm [thread:$0]  %s471, 256, %s469, %s455, 128, 128, 8
        $region48: #{tpu_custom_call.1} parent=31 // pred_fallthru
          _
      $region32: #{tpu_custom_call.1} parent=5 // pred_fallthru
        _
      %p477 = scmp.le.s32.totalorder 2, %s16
      // Predicated region
      $region49: #{tpu_custom_call.1} parent=5 // pred_check
        %p478 = pneg %p477
      $region50: #{tpu_custom_call.1} parent=5 // pred_check_branch
        %480 = sbr.rel (%p478) target = $region52
      $region51: #{tpu_custom_call.1} parent=5 // pred_region
        %s481 = ssub.s32 %s16, 2
        // Predicated region
        $region53: #{tpu_custom_call.1} parent=51 // pred_check
          %p482 = pneg %p127
        $region54: #{tpu_custom_call.1} parent=51 // pred_check_branch
          %484 = sbr.rel (%p482) target = $region56
        $region55: #{tpu_custom_call.1} parent=51 // pred_region
          %s485 = sand.u32 %s112, 1
          %s486 = scalar_lea.sflag [#allocation5], %s485
          %s487 = sand.u32 %s112, 1
          %s488 = smul.addr %s487, 16
          %s489 = scalar_lea.vmem [#allocation8], %s488
          %490 = dma.done %s486, 256
        $region56: #{tpu_custom_call.1} parent=51 // pred_fallthru
          _
      $region52: #{tpu_custom_call.1} parent=5 // pred_fallthru
        _
    $region6: #{tpu_custom_call.1} parent=1 // loop_footer
      %s20 = sadd.s32 1, %s16
    $region7: #{tpu_custom_call.1} parent=1 // loop_footer_branch
      %15 = sbr.rel target = $region3
    $region8: #{tpu_custom_call.1} parent=1 // loop_exit
      _
    %491 = vsyncpa [#allocation4], 1
    %s492 = scalar_lea.sflag [#allocation4], 1
    %493 = vsyncpa %s492, 1
    %494 = vsyncpa [#allocation7], 1
    %495 = vsyncpa [#allocation5], 1
    %s496 = scalar_lea.sflag [#allocation5], 1
    %497 = vsyncpa %s496, 1

</llo_original>
